<compile_context>
chip_gen: v7x
topology: tpu7x:2x2x1
jax: 0.10.0
libtpu: 0.0.40
codegen_flags: <defaults>
</compile_context>

<pallas_src>
import functools

import jax
import jax.numpy as jnp
from jax.experimental import pallas as pl
from jax.experimental.pallas import tpu as pltpu

# ----------------------------- config (small, static) -----------------------------
BATCH = 8          # graphs per pallas_call (grid axis, "parallel")
N = 128            # nodes per graph (128 -> (8,128)-aligned tiles)
IN_FEATS = 16      # input feature dim
HIDDEN = 32        # SGConv output dim
OUT_FEAT = 8       # num classes
K_HOPS = 2         # SGConv k
PAD_OUT = 128      # lane-dense padded output width (sliced back to OUT_FEAT in wrapper)


def _sgc_mlp_kernel(s_ref, x_ref, wct_ref, bc_ref, w2t_ref, b2_ref, out_ref, *, k):
    # Fused (SGConv fc ∘ MLP layer-0) projection applied BEFORE propagation: (N, IN) @ (IN, P)
    h = jnp.dot(x_ref[...], wct_ref[...], preferred_element_type=jnp.float32)

    # k-hop propagation on the pre-normalized adjacency S = D^-1/2 A^T D^-1/2 (pure MXU).
    for _ in range(k):
        h = jnp.dot(s_ref[...], h, preferred_element_type=jnp.float32)

    # fused bias + ReLU (MLP activation on every non-last layer; dropout=0 -> no dropout)
    # TODO(synk): dropout>0 path of MLP.forward not implemented (would need pltpu.prng_*).
    h = jnp.maximum(h + bc_ref[...], 0.0)

    # final MLP layer; weights pre-transposed and zero-padded to a lane-dense 128-wide output.
    out_ref[...] = (jnp.dot(h, w2t_ref[...], preferred_element_type=jnp.float32)
                    + b2_ref[...]).astype(out_ref.dtype)


def sgc_mlp_forward(adj, x, params, *, k=K_HOPS):
    """Batched SGC + MLP-head forward. adj: (B,N,N), x: (B,N,F_in)."""
    w_sgc, b_sgc, w1, b1, w2, b2 = params
    b_sz, n, _ = adj.shape
    f_in = x.shape[-1]
    proj = w1.shape[0]        # fused projection width (MLP layer-0 out)
    out_d = w2.shape[0]

    # ---- one-time host/XLA preprocessing (hoisted out of the kernel) ----
    adj = adj.astype(jnp.float32)
    deg = jnp.maximum(jnp.sum(adj, axis=-2), 1.0)          # (B, N) in-degree, clamp >= 1
    nrm = deg ** -0.5
    # S = D^-1/2 A^T D^-1/2  (folds both norm multiplies of every hop into the adjacency)
    s = nrm[:, :, None] * jnp.swapaxes(adj, -1, -2) * nrm[:, None, :]

    # Fuse SGConv fc with MLP layer 0 and pre-transpose everything to [in, out] layout.
    w_comb_t = (w1 @ w_sgc).T                               # (f_in, proj)
    b_comb = b_sgc @ w1.T + b1                              # (1, proj)
    w2_t = jnp.zeros((proj, PAD_OUT), jnp.float32).at[:, :out_d].set(w2.T)
    b2_p = jnp.zeros((1, PAD_OUT), jnp.float32).at[:, :out_d].set(b2)

    out = pl.pallas_call(
        functools.partial(_sgc_mlp_kernel, k=k),
        out_shape=jax.ShapeDtypeStruct((b_sz, n, PAD_OUT), jnp.float32),
        grid=(b_sz,),
        in_specs=[
            pl.BlockSpec((None, n, n), lambda b: (b, 0, 0)),        # S, per graph
            pl.BlockSpec((None, n, f_in), lambda b: (b, 0, 0)),     # x, per graph
            pl.BlockSpec((f_in, proj), lambda b: (0, 0)),           # fused weight (shared)
            pl.BlockSpec((1, proj), lambda b: (0, 0)),              # fused bias
            pl.BlockSpec((proj, PAD_OUT), lambda b: (0, 0)),        # final weight (padded)
            pl.BlockSpec((1, PAD_OUT), lambda b: (0, 0)),           # final bias (padded)
        ],
        out_specs=pl.BlockSpec((None, n, PAD_OUT), lambda b: (b, 0, 0)),
        compiler_params=pltpu.CompilerParams(
            dimension_semantics=("parallel",)),                     # shards over v7x's 2 TCs
    )(s, x.astype(jnp.float32), w_comb_t, b_comb, w2_t, b2_p)

    return out[..., :out_d]                                         # drop lane padding


def _reference(adj, x, params, *, k=K_HOPS):
    """Unfused pure-JAX reference matching the original (SGConv + MLP) semantics."""
    w_sgc, b_sgc, w1, b1, w2, b2 = params

    def one(adj_g, x_g):
        adj_g = adj_g.astype(jnp.float32)
        h = x_g.astype(jnp.float32)
        deg = jnp.maximum(jnp.sum(adj_g, axis=0), 1.0)
        norm = (deg ** -0.5)[:, None]
        for _ in range(k):
            h = norm * (adj_g.T @ (norm * h))
        h = h @ w_sgc.T + b_sgc
        h = jnp.maximum(h @ w1.T + b1, 0.0)
        h = h @ w2.T + b2
        return h

    return jax.vmap(one)(adj, x)


if __name__ == "__main__":
    key = jax.random.PRNGKey(0)
    k_adj, k_x, k0, k1, k2, k3, k4, k5 = jax.random.split(key, 8)

    # deterministic symmetric 0/1 adjacency per graph (no self loops), batched
    a = (jax.random.uniform(k_adj, (BATCH, N, N)) < 0.05).astype(jnp.float32)
    adj = jnp.maximum(a, jnp.swapaxes(a, -1, -2))

    x = jax.random.normal(k_x, (BATCH, N, IN_FEATS), dtype=jnp.float32)

    # PyTorch Linear-style params: weight [out, in], bias [out]
    def lin_init(kw, kb, out_d, in_d):
        bound = 1.0 / (in_d ** 0.5)
        w = jax.random.uniform(kw, (out_d, in_d), minval=-bound, maxval=bound, dtype=jnp.float32)
        b = jax.random.uniform(kb, (1, out_d), minval=-bound, maxval=bound, dtype=jnp.float32)
        return w, b

    w_sgc, b_sgc = lin_init(k0, k1, HIDDEN, IN_FEATS)      # SGConv fc
    w1, b1 = lin_init(k2, k3, OUT_FEAT, HIDDEN)            # MLP layer 0
    w2, b2 = lin_init(k4, k5, OUT_FEAT, OUT_FEAT)          # MLP layer 1 (output, no act)
    params = (w_sgc, b_sgc, w1, b1, w2, b2)

    out = sgc_mlp_forward(adj, x, params)
    out = jax.block_until_ready(out)

    ref = _reference(adj, x, params)
    assert out.shape == (BATCH, N, OUT_FEAT)
    assert jnp.allclose(out, ref, atol=1e-4, rtol=1e-4), "mismatch vs reference"

    print("KERNEL_OK")
</pallas_src>

<mosaic_0001>
module attributes {stable_mosaic.version = 11 : i64} {
  func.func @_sgc_mlp_kernel(%arg0: i32, %arg1: memref<1x128x128xf32, #tpu.memory_space<vmem>>, %arg2: memref<1x128x16xf32, #tpu.memory_space<vmem>>, %arg3: memref<16x8xf32, #tpu.memory_space<vmem>>, %arg4: memref<1x8xf32, #tpu.memory_space<vmem>>, %arg5: memref<8x128xf32, #tpu.memory_space<vmem>>, %arg6: memref<1x128xf32, #tpu.memory_space<vmem>>, %arg7: memref<1x128x128xf32, #tpu.memory_space<vmem>>) attributes {dimension_semantics = [#tpu.dimension_semantics<parallel>], iteration_bounds = array<i64: 8>, scalar_prefetch = 0 : i64, scratch_operands = 0 : i64, tpu.core_type = #tpu.core_type<tc>, window_params = [{transform_indices = @transform_0, window_bounds = array<i64: 1, 128, 128>}, {transform_indices = @transform_1, window_bounds = array<i64: 1, 128, 16>}, {pipeline_mode = #tpu.pipeline_mode<synchronous>, transform_indices = @transform_2, window_bounds = array<i64: 16, 8>}, {pipeline_mode = #tpu.pipeline_mode<synchronous>, transform_indices = @transform_3, window_bounds = array<i64: 1, 8>}, {pipeline_mode = #tpu.pipeline_mode<synchronous>, transform_indices = @transform_4, window_bounds = array<i64: 8, 128>}, {pipeline_mode = #tpu.pipeline_mode<synchronous>, transform_indices = @transform_5, window_bounds = array<i64: 1, 128>}, {transform_indices = @transform_6, window_bounds = array<i64: 1, 128, 128>}]} {
    %c0 = arith.constant 0 : index
    %c0_0 = arith.constant 0 : index
    %c0_1 = arith.constant 0 : index
    %0 = vector.load %arg2[%c0, %c0_0, %c0_1] : memref<1x128x16xf32, #tpu.memory_space<vmem>>, vector<1x128x16xf32>
    %1 = vector.shape_cast %0 : vector<1x128x16xf32> to vector<128x16xf32>
    %c0_2 = arith.constant 0 : index
    %c0_3 = arith.constant 0 : index
    %2 = vector.load %arg3[%c0_2, %c0_3] : memref<16x8xf32, #tpu.memory_space<vmem>>, vector<16x8xf32>
    %cst = arith.constant dense<0.000000e+00> : vector<128x8xf32>
    %3 = tpu.matmul %1, %2, %cst {dimension_numbers = #tpu.dot_dimension_numbers<[1], [0], [0], [1], [0, 0, 1, 1], [], []>} : vector<128x16xf32>, vector<16x8xf32>, vector<128x8xf32> -> vector<128x8xf32>
    %c0_4 = arith.constant 0 : index
    %c0_5 = arith.constant 0 : index
    %c0_6 = arith.constant 0 : index
    %4 = vector.load %arg1[%c0_4, %c0_5, %c0_6] : memref<1x128x128xf32, #tpu.memory_space<vmem>>, vector<1x128x128xf32>
    %5 = vector.shape_cast %4 : vector<1x128x128xf32> to vector<128x128xf32>
    %cst_7 = arith.constant dense<0.000000e+00> : vector<128x8xf32>
    %6 = tpu.matmul %5, %3, %cst_7 {dimension_numbers = #tpu.dot_dimension_numbers<[1], [0], [0], [1], [0, 0, 1, 1], [], []>} : vector<128x128xf32>, vector<128x8xf32>, vector<128x8xf32> -> vector<128x8xf32>
    %c0_8 = arith.constant 0 : index
    %c0_9 = arith.constant 0 : index
    %c0_10 = arith.constant 0 : index
    %7 = vector.load %arg1[%c0_8, %c0_9, %c0_10] : memref<1x128x128xf32, #tpu.memory_space<vmem>>, vector<1x128x128xf32>
    %8 = vector.shape_cast %7 : vector<1x128x128xf32> to vector<128x128xf32>
    %cst_11 = arith.constant dense<0.000000e+00> : vector<128x8xf32>
    %9 = tpu.matmul %8, %6, %cst_11 {dimension_numbers = #tpu.dot_dimension_numbers<[1], [0], [0], [1], [0, 0, 1, 1], [], []>} : vector<128x128xf32>, vector<128x8xf32>, vector<128x8xf32> -> vector<128x8xf32>
    %c0_12 = arith.constant 0 : index
    %c0_13 = arith.constant 0 : index
    %10 = vector.load %arg4[%c0_12, %c0_13] : memref<1x8xf32, #tpu.memory_space<vmem>>, vector<1x8xf32>
    %11 = vector.broadcast %10 : vector<1x8xf32> to vector<128x8xf32>
    %12 = arith.addf %9, %11 : vector<128x8xf32>
    %cst_14 = arith.constant 0.000000e+00 : f32
    %13 = vector.broadcast %cst_14 : f32 to vector<128x8xf32>
    %14 = arith.maximumf %12, %13 : vector<128x8xf32>
    %c0_15 = arith.constant 0 : index
    %c0_16 = arith.constant 0 : index
    %15 = vector.load %arg5[%c0_15, %c0_16] : memref<8x128xf32, #tpu.memory_space<vmem>>, vector<8x128xf32>
    %cst_17 = arith.constant dense<0.000000e+00> : vector<128x128xf32>
    %16 = tpu.matmul %14, %15, %cst_17 {dimension_numbers = #tpu.dot_dimension_numbers<[1], [0], [0], [1], [0, 0, 1, 1], [], []>} : vector<128x8xf32>, vector<8x128xf32>, vector<128x128xf32> -> vector<128x128xf32>
    %c0_18 = arith.constant 0 : index
    %c0_19 = arith.constant 0 : index
    %17 = vector.load %arg6[%c0_18, %c0_19] : memref<1x128xf32, #tpu.memory_space<vmem>>, vector<1x128xf32>
    %18 = vector.broadcast %17 : vector<1x128xf32> to vector<128x128xf32>
    %19 = arith.addf %16, %18 : vector<128x128xf32>
    %c0_20 = arith.constant 0 : index
    %c0_21 = arith.constant 0 : index
    %c0_22 = arith.constant 0 : index
    %20 = vector.load %arg7[%c0_20, %c0_21, %c0_22] : memref<1x128x128xf32, #tpu.memory_space<vmem>>, vector<1x128x128xf32>
    %21 = vector.shape_cast %20 : vector<1x128x128xf32> to vector<128x128xf32>
    %22 = vector.shape_cast %19 : vector<128x128xf32> to vector<1x128x128xf32>
    tpu.vector_store %arg7[%c0_20, %c0_21, %c0_22], %22 {strides = array<i32>} : memref<1x128x128xf32, #tpu.memory_space<vmem>>, vector<1x128x128xf32>,
    return
  }
  func.func @transform_0(%arg0: i32) -> (i32, i32, i32) {
    %c0_i32 = arith.constant 0 : i32
    %c0_i32_0 = arith.constant 0 : i32
    %c0_i32_1 = arith.constant 0 : i32
    return %arg0, %c0_i32, %c0_i32_0 : i32, i32, i32
  }
  func.func @transform_1(%arg0: i32) -> (i32, i32, i32) {
    %c0_i32 = arith.constant 0 : i32
    %c0_i32_0 = arith.constant 0 : i32
    %c0_i32_1 = arith.constant 0 : i32
    return %arg0, %c0_i32, %c0_i32_0 : i32, i32, i32
  }
  func.func @transform_2(%arg0: i32) -> (i32, i32) {
    %c0_i32 = arith.constant 0 : i32
    %c0_i32_0 = arith.constant 0 : i32
    %c0_i32_1 = arith.constant 0 : i32
    return %c0_i32, %c0_i32_0 : i32, i32
  }
  func.func @transform_3(%arg0: i32) -> (i32, i32) {
    %c0_i32 = arith.constant 0 : i32
    %c0_i32_0 = arith.constant 0 : i32
    %c0_i32_1 = arith.constant 0 : i32
    return %c0_i32, %c0_i32_0 : i32, i32
  }
  func.func @transform_4(%arg0: i32) -> (i32, i32) {
    %c0_i32 = arith.constant 0 : i32
    %c0_i32_0 = arith.constant 0 : i32
    %c0_i32_1 = arith.constant 0 : i32
    return %c0_i32, %c0_i32_0 : i32, i32
  }
  func.func @transform_5(%arg0: i32) -> (i32, i32) {
    %c0_i32 = arith.constant 0 : i32
    %c0_i32_0 = arith.constant 0 : i32
    %c0_i32_1 = arith.constant 0 : i32
    return %c0_i32, %c0_i32_0 : i32, i32
  }
  func.func @transform_6(%arg0: i32) -> (i32, i32, i32) {
    %c0_i32 = arith.constant 0 : i32
    %c0_i32_0 = arith.constant 0 : i32
    %c0_i32_1 = arith.constant 0 : i32
    return %arg0, %c0_i32, %c0_i32_0 : i32, i32, i32
  }
}

</mosaic_0001>

<llo_original>
// kernel: tpu_custom_call.1
$region0: #{tpu_custom_call.1}
  #allocation0 [shape = 'u32[]', space=smem, size = 0x4, offset = 0x4, fixed_abs, tag = 'smem constant byte address 0x4 - core index']
  #allocation1 [shape = 'u32[144,128]{1,0:T(1,128)}', space=vmem, size = 0x12000, scoped, tag = 'internal scratch']
  %s0 = inlined_call_operand.vmem [shape: f32[8,128,128], index: 0, kind: input, shape index: {}]
  %s1 = inlined_call_operand.vmem [shape: f32[8,128,16], index: 1, kind: input, shape index: {}]
  %s2 = inlined_call_operand.vmem [shape: f32[16,8], index: 2, kind: input, shape index: {}]
  %s3 = inlined_call_operand.vmem [shape: f32[1,8], index: 3, kind: input, shape index: {}]
  %s4 = inlined_call_operand.vmem [shape: f32[8,128], index: 4, kind: input, shape index: {}]
  %s5 = inlined_call_operand.vmem [shape: f32[1,128], index: 5, kind: input, shape index: {}]
  %s6 = inlined_call_operand.hbm [shape: f32[8,128,128], index: 6, kind: output, shape index: {}]
  %s7 = sld [smem:[#allocation0]]
  $region57: #{tpu_custom_call.1} parent=0
    _
  %s9 = ssub.s32 1, %s7
  %s10 = scalar_select 0, %s9, %s7
  $region1: #{tpu_custom_call.1} parent=0
    #allocation2 [shape = 'u8[131072]{0}', space=vmem, size = 0x20000, scoped, tag = 'output window, operand 0']
    #allocation3 [shape = 's32[2]{0}', space=sflag, size = 0x8, scoped, tag = 'scoped memory for tpu_custom_call.1']
    %11 = vsyncpa [#allocation3], 0
    %s12 = scalar_lea.sflag [#allocation3], 1
    %13 = vsyncpa %s12, 0
    loop: start=0, step=1, limit=10
    $region2: #{tpu_custom_call.1} parent=1 // loop_pre_header
      _
    $region3: #{tpu_custom_call.1} parent=1 // loop_header
      %s15 = sphi 0, %s19
      %p16 = scmp.ge.s32.totalorder %s15, 10
      %s25 = sphi 0, %s27
      %s28 = sphi 0, %s25
      %s29 = sphi 0, %s28
      %s45 = sphi 0, %s29
      %s51 = sphi 0, %s53
      %s54 = sphi 0, %s51
      %s55 = sphi 0, %s54
      %s71 = sphi 0, %s55
      %s75 = sphi 0, %s75
      %s77 = sphi 0, %s75
      %s78 = sphi 0, %s77
      %s92 = sphi 0, %s78
      %s96 = sphi 0, %s96
      %s98 = sphi 0, %s96
      %s99 = sphi 0, %s98
      %s113 = sphi 0, %s99
      %s117 = sphi 0, %s117
      %s119 = sphi 0, %s117
      %s120 = sphi 0, %s119
      %s134 = sphi 0, %s120
      %s138 = sphi 0, %s138
      %s140 = sphi 0, %s138
      %s141 = sphi 0, %s140
      %s155 = sphi 0, %s141
      %s161 = sphi 0, %s163
      %s164 = sphi 0, %s161
      %s165 = sphi 0, %s164
      %s181 = sphi 0, %s165
    $region4: #{tpu_custom_call.1} parent=1 // loop_header_branch
      %18 = sbr.rel (%p16) target = $region8
    $region5: #{tpu_custom_call.1} parent=1 // loop_body
      %s20 = ssub.s32 %s15, 1
      %s21 = ssub.s32 %s15, 2
      %s22 = sadd.s32 %s15, 1
      %s23 = ssub.s32 %s15, %s22
      %p24 = scmp.eq.s32.totalorder %s23, 0
      %s26 = sadd.s32 %s25, 1
      %s27 = scalar_select %p24, %s25, %s26
      %p30 = pneg %p24
      %p31 = scmp.eq.s32.totalorder %s15, 7
      %p32 = por %p30, %p31
      %p33 = scmp.ne.s32.totalorder %s25, %s28
      %p34 = scmp.eq.s32.totalorder %s15, 0
      %p35 = por %p33, %p34
      %p36 = scmp.ne.s32.totalorder %s25, %s28
      %p37 = scmp.eq.s32.totalorder %s20, 7
      %p38 = por %p36, %p37
      %p39 = scmp.ne.s32.totalorder %s28, %s29
      %p40 = scmp.eq.s32.totalorder %s20, 0
      %p41 = por %p39, %p40
      %p42 = scmp.ne.s32.totalorder %s28, %s29
      %p43 = scmp.eq.s32.totalorder %s21, 7
      %p44 = por %p42, %p43
      %p46 = scmp.ne.s32.totalorder %s29, %s45
      %p47 = scmp.eq.s32.totalorder %s21, 0
      %p48 = por %p46, %p47
      %s49 = ssub.s32 %s15, %s22
      %p50 = scmp.eq.s32.totalorder %s49, 0
      %s52 = sadd.s32 %s51, 1
      %s53 = scalar_select %p50, %s51, %s52
      %p56 = pneg %p50
      %p57 = scmp.eq.s32.totalorder %s15, 7
      %p58 = por %p56, %p57
      %p59 = scmp.ne.s32.totalorder %s51, %s54
      %p60 = scmp.eq.s32.totalorder %s15, 0
      %p61 = por %p59, %p60
      %p62 = scmp.ne.s32.totalorder %s51, %s54
      %p63 = scmp.eq.s32.totalorder %s20, 7
      %p64 = por %p62, %p63
      %p65 = scmp.ne.s32.totalorder %s54, %s55
      %p66 = scmp.eq.s32.totalorder %s20, 0
      %p67 = por %p65, %p66
      %p68 = scmp.ne.s32.totalorder %s54, %s55
      %p69 = scmp.eq.s32.totalorder %s21, 7
      %p70 = por %p68, %p69
      %p72 = scmp.ne.s32.totalorder %s55, %s71
      %p73 = scmp.eq.s32.totalorder %s21, 0
      %p74 = por %p72, %p73
      %s76 = sadd.s32 %s75, 1
      %p79 = scmp.eq.s32.totalorder %s15, 7
      %p80 = scmp.ne.s32.totalorder %s75, %s77
      %p81 = scmp.eq.s32.totalorder %s15, 0
      %p82 = por %p80, %p81
      %p83 = scmp.ne.s32.totalorder %s75, %s77
      %p84 = scmp.eq.s32.totalorder %s20, 7
      %p85 = por %p83, %p84
      %p86 = scmp.ne.s32.totalorder %s77, %s78
      %p87 = scmp.eq.s32.totalorder %s20, 0
      %p88 = por %p86, %p87
      %p89 = scmp.ne.s32.totalorder %s77, %s78
      %p90 = scmp.eq.s32.totalorder %s21, 7
      %p91 = por %p89, %p90
      %p93 = scmp.ne.s32.totalorder %s78, %s92
      %p94 = scmp.eq.s32.totalorder %s21, 0
      %p95 = por %p93, %p94
      %s97 = sadd.s32 %s96, 1
      %p100 = scmp.eq.s32.totalorder %s15, 7
      %p101 = scmp.ne.s32.totalorder %s96, %s98
      %p102 = scmp.eq.s32.totalorder %s15, 0
      %p103 = por %p101, %p102
      %p104 = scmp.ne.s32.totalorder %s96, %s98
      %p105 = scmp.eq.s32.totalorder %s20, 7
      %p106 = por %p104, %p105
      %p107 = scmp.ne.s32.totalorder %s98, %s99
      %p108 = scmp.eq.s32.totalorder %s20, 0
      %p109 = por %p107, %p108
      %p110 = scmp.ne.s32.totalorder %s98, %s99
      %p111 = scmp.eq.s32.totalorder %s21, 7
      %p112 = por %p110, %p111
      %p114 = scmp.ne.s32.totalorder %s99, %s113
      %p115 = scmp.eq.s32.totalorder %s21, 0
      %p116 = por %p114, %p115
      %s118 = sadd.s32 %s117, 1
      %p121 = scmp.eq.s32.totalorder %s15, 7
      %p122 = scmp.ne.s32.totalorder %s117, %s119
      %p123 = scmp.eq.s32.totalorder %s15, 0
      %p124 = por %p122, %p123
      %p125 = scmp.ne.s32.totalorder %s117, %s119
      %p126 = scmp.eq.s32.totalorder %s20, 7
      %p127 = por %p125, %p126
      %p128 = scmp.ne.s32.totalorder %s119, %s120
      %p129 = scmp.eq.s32.totalorder %s20, 0
      %p130 = por %p128, %p129
      %p131 = scmp.ne.s32.totalorder %s119, %s120
      %p132 = scmp.eq.s32.totalorder %s21, 7
      %p133 = por %p131, %p132
      %p135 = scmp.ne.s32.totalorder %s120, %s134
      %p136 = scmp.eq.s32.totalorder %s21, 0
      %p137 = por %p135, %p136
      %s139 = sadd.s32 %s138, 1
      %p142 = scmp.eq.s32.totalorder %s15, 7
      %p143 = scmp.ne.s32.totalorder %s138, %s140
      %p144 = scmp.eq.s32.totalorder %s15, 0
      %p145 = por %p143, %p144
      %p146 = scmp.ne.s32.totalorder %s138, %s140
      %p147 = scmp.eq.s32.totalorder %s20, 7
      %p148 = por %p146, %p147
      %p149 = scmp.ne.s32.totalorder %s140, %s141
      %p150 = scmp.eq.s32.totalorder %s20, 0
      %p151 = por %p149, %p150
      %p152 = scmp.ne.s32.totalorder %s140, %s141
      %p153 = scmp.eq.s32.totalorder %s21, 7
      %p154 = por %p152, %p153
      %p156 = scmp.ne.s32.totalorder %s141, %s155
      %p157 = scmp.eq.s32.totalorder %s21, 0
      %p158 = por %p156, %p157
      %s159 = ssub.s32 %s15, %s22
      %p160 = scmp.eq.s32.totalorder %s159, 0
      %s162 = sadd.s32 %s161, 1
      %s163 = scalar_select %p160, %s161, %s162
      %p166 = pneg %p160
      %p167 = scmp.eq.s32.totalorder %s15, 7
      %p168 = por %p166, %p167
      %p169 = scmp.ne.s32.totalorder %s161, %s164
      %p170 = scmp.eq.s32.totalorder %s15, 0
      %p171 = por %p169, %p170
      %p172 = scmp.ne.s32.totalorder %s161, %s164
      %p173 = scmp.eq.s32.totalorder %s20, 7
      %p174 = por %p172, %p173
      %p175 = scmp.ne.s32.totalorder %s164, %s165
      %p176 = scmp.eq.s32.totalorder %s20, 0
      %p177 = por %p175, %p176
      %p178 = scmp.ne.s32.totalorder %s164, %s165
      %p179 = scmp.eq.s32.totalorder %s21, 7
      %p180 = por %p178, %p179
      %p182 = scmp.ne.s32.totalorder %s165, %s181
      %p183 = scmp.eq.s32.totalorder %s21, 0
      %p184 = por %p182, %p183
      %p185 = scmp.le.s32.totalorder 1, %s15
      %p186 = scmp.lt.s32.totalorder %s15, 9
      %p187 = pnand %p185, %p186
      %p188 = pneg %p187
      // Predicated region
      $region9: #{tpu_custom_call.1} parent=5 // pred_check
        _
      $region10: #{tpu_custom_call.1} parent=5 // pred_check_branch
        %190 = sbr.rel (%p187) target = $region12
      $region11: #{tpu_custom_call.1} parent=5 // pred_region
        %s191 = ssub.s32 %s15, 1
        // Predicated region
        $region13: #{tpu_custom_call.1} parent=11 // pred_check
          %p192 = pneg %p88
        $region14: #{tpu_custom_call.1} parent=11 // pred_check_branch
          %194 = sbr.rel (%p192) target = $region16
        $region15: #{tpu_custom_call.1} parent=11 // pred_region
          _
        $region16: #{tpu_custom_call.1} parent=11 // pred_fallthru
          _
        // Predicated region
        $region17: #{tpu_custom_call.1} parent=11 // pred_check
          %p195 = pneg %p109
        $region18: #{tpu_custom_call.1} parent=11 // pred_check_branch
          %197 = sbr.rel (%p195) target = $region20
        $region19: #{tpu_custom_call.1} parent=11 // pred_region
          _
        $region20: #{tpu_custom_call.1} parent=11 // pred_fallthru
          _
        // Predicated region
        $region21: #{tpu_custom_call.1} parent=11 // pred_check
          %p198 = pneg %p130
        $region22: #{tpu_custom_call.1} parent=11 // pred_check_branch
          %200 = sbr.rel (%p198) target = $region24
        $region23: #{tpu_custom_call.1} parent=11 // pred_region
          _
        $region24: #{tpu_custom_call.1} parent=11 // pred_fallthru
          _
        // Predicated region
        $region25: #{tpu_custom_call.1} parent=11 // pred_check
          %p201 = pneg %p151
        $region26: #{tpu_custom_call.1} parent=11 // pred_check_branch
          %203 = sbr.rel (%p201) target = $region28
        $region27: #{tpu_custom_call.1} parent=11 // pred_region
          _
        $region28: #{tpu_custom_call.1} parent=11 // pred_fallthru
          _
      $region12: #{tpu_custom_call.1} parent=5 // pred_fallthru
        _
      %p204 = scmp.lt.s32.totalorder %s15, 8
      // Predicated region
      $region29: #{tpu_custom_call.1} parent=5 // pred_check
        %p205 = pneg %p204
      $region30: #{tpu_custom_call.1} parent=5 // pred_check_branch
        %207 = sbr.rel (%p205) target = $region32
      $region31: #{tpu_custom_call.1} parent=5 // pred_region
        // Predicated region
        $region33: #{tpu_custom_call.1} parent=31 // pred_check
          %p208 = pneg %p35
        $region34: #{tpu_custom_call.1} parent=31 // pred_check_branch
          %210 = sbr.rel (%p208) target = $region36
        $region35: #{tpu_custom_call.1} parent=31 // pred_region
          %p211 = scmp.lt.s32.totalorder %s15, 7
          %s212 = scalar_select %p211, %s15, 7
          %s213 = smul.addr %s212, 16
          %s214 = smul.addr %s213, 8
          %s215 = scalar_lea.vmem %s0, %s214
        $region36: #{tpu_custom_call.1} parent=31 // pred_fallthru
          _
        // Predicated region
        $region37: #{tpu_custom_call.1} parent=31 // pred_check
          %p216 = pneg %p61
        $region38: #{tpu_custom_call.1} parent=31 // pred_check_branch
          %218 = sbr.rel (%p216) target = $region40
        $region39: #{tpu_custom_call.1} parent=31 // pred_region
          %p219 = scmp.lt.s32.totalorder %s15, 7
          %s220 = scalar_select %p219, %s15, 7
          %s221 = smul.addr %s220, 16
          %s222 = smul.addr %s221, 8
          %s223 = scalar_lea.vmem %s1, %s222
        $region40: #{tpu_custom_call.1} parent=31 // pred_fallthru
          _
      $region32: #{tpu_custom_call.1} parent=5 // pred_fallthru
        _
      %p224 = scmp.le.s32.totalorder 1, %s15
      %p225 = scmp.lt.s32.totalorder %s15, 9
      %p226 = pnand %p224, %p225
      %p227 = pneg %p226
      // Predicated region
      $region41: #{tpu_custom_call.1} parent=5 // pred_check
        _
      $region42: #{tpu_custom_call.1} parent=5 // pred_check_branch
        %229 = sbr.rel (%p226) target = $region44
      $region43: #{tpu_custom_call.1} parent=5 // pred_region
        %s230 = ssub.s32 %s15, 1
        %p231 = scmp.lt.s32.totalorder %s20, 7
        %s232 = scalar_select %p231, %s20, 7
        %s233 = smul.addr %s232, 16
        %s234 = smul.addr %s233, 8
        %s235 = scalar_lea.vmem %s0, %s234
        %p236 = pneg %p41
        %p237 = pneg %p38
        %p238 = scmp.lt.s32.totalorder %s20, 7
        %s239 = scalar_select %p238, %s20, 7
        %s240 = smul.addr %s239, 16
        %s241 = smul.addr %s240, 8
        %s242 = scalar_lea.vmem %s1, %s241
        %p243 = pneg %p67
        %p244 = pneg %p64
        %p245 = pneg %p88
        %p246 = pneg %p85
        %p247 = pneg %p109
        %p248 = pneg %p106
        %p249 = pneg %p130
        %p250 = pneg %p127
        %p251 = pneg %p151
        %p252 = pneg %p148
        %p253 = pneg %p177
        %p254 = pneg %p174
        %s255 = sand.u32 %s164, 1
        %s256 = scalar_lea.sflag [#allocation3], %s255
        %s257 = sand.u32 %s164, 1
        %s258 = smul.addr %s257, 128
        %s259 = scalar_lea.vmem [#allocation2], %s258
        %p260 = scmp.lt.s32.totalorder %s20, 7
        %s261 = scalar_select %p260, %s20, 7
        %s262 = smul.addr %s261, 16
        %s263 = smul.addr %s262, 8
        %s264 = scalar_lea.vmem %s0, %s263
        %p265 = scmp.lt.s32.totalorder %s20, 7
        %s266 = scalar_select %p265, %s20, 7
        %s267 = smul.addr %s266, 16
        %s268 = smul.addr %s267, 8
        %s269 = scalar_lea.vmem %s1, %s268
        %v270 = vld [vmem:[%s269] sm:$0xff]
        %v271 = vld [vmem:[%s269 + $0x8] sm:$0xff]
        %v272 = vld [vmem:[%s269 + $0x10] sm:$0xff]
        %v273 = vld [vmem:[%s269 + $0x18] sm:$0xff]
        %v274 = vld [vmem:[%s269 + $0x20] sm:$0xff]
        %v275 = vld [vmem:[%s269 + $0x28] sm:$0xff]
        %v276 = vld [vmem:[%s269 + $0x30] sm:$0xff]
        %v277 = vld [vmem:[%s269 + $0x38] sm:$0xff]
        %v278 = vld [vmem:[%s269 + $0x40] sm:$0xff]
        %v279 = vld [vmem:[%s269 + $0x48] sm:$0xff]
        %v280 = vld [vmem:[%s269 + $0x50] sm:$0xff]
        %v281 = vld [vmem:[%s269 + $0x58] sm:$0xff]
        %v282 = vld [vmem:[%s269 + $0x60] sm:$0xff]
        %v283 = vld [vmem:[%s269 + $0x68] sm:$0xff]
        %v284 = vld [vmem:[%s269 + $0x70] sm:$0xff]
        %v285 = vld [vmem:[%s269 + $0x78] sm:$0xff]
        %v286 = vld [vmem:[%s2] sm:$0xff]
        %v287 = vld [vmem:[%s2 + $0x8] sm:$0xff]
        %vm288 = vcmask 130048
        %v290 = vsel %vm288, %v270, 0
        %v293 = vsel %vm288, %v271, 0
        %v296 = vsel %vm288, %v272, 0
        %v299 = vsel %vm288, %v273, 0
        %v302 = vsel %vm288, %v274, 0
        %v305 = vsel %vm288, %v275, 0
        %v308 = vsel %vm288, %v276, 0
        %v311 = vsel %vm288, %v277, 0
        %v314 = vsel %vm288, %v278, 0
        %v317 = vsel %vm288, %v279, 0
        %v320 = vsel %vm288, %v280, 0
        %v323 = vsel %vm288, %v281, 0
        %v326 = vsel %vm288, %v282, 0
        %v329 = vsel %vm288, %v283, 0
        %v332 = vsel %vm288, %v284, 0
        %v335 = vsel %vm288, %v285, 0
        %337 = vmatprep.subr.mxu0 0.0
        %338 = vmatpush1.msra.mxu0 %v286
        %339 = vmatprep.subr.mxu0 0.0
        %340 = vmatpush1.msra.mxu0 %v287
        %341 = vmatprep.subr.mxu0 0.0
        %342 = vmatpush1.msra.mxu0 0.0
        %343 = vmatprep.subr.mxu0 0.0
        %344 = vmatpush1.msra.mxu0 0.0
        %345 = vmatprep.subr.mxu0 0.0
        %346 = vmatpush1.msra.mxu0 0.0
        %347 = vmatprep.subr.mxu0 0.0
        %348 = vmatpush1.msra.mxu0 0.0
        %349 = vmatprep.subr.mxu0 0.0
        %350 = vmatpush1.msra.mxu0 0.0
        %351 = vmatprep.subr.mxu0 0.0
        %352 = vmatpush1.msra.mxu0 0.0
        %353 = vmatprep.subr.mxu0 0.0
        %354 = vmatpush1.msra.mxu0 0.0
        %355 = vmatprep.subr.mxu0 0.0
        %356 = vmatpush1.msra.mxu0 0.0
        %357 = vmatprep.subr.mxu0 0.0
        %358 = vmatpush1.msra.mxu0 0.0
        %359 = vmatprep.subr.mxu0 0.0
        %360 = vmatpush1.msra.mxu0 0.0
        %361 = vmatprep.subr.mxu0 0.0
        %362 = vmatpush1.msra.mxu0 0.0
        %363 = vmatprep.subr.mxu0 0.0
        %364 = vmatpush1.msra.mxu0 0.0
        %365 = vmatprep.subr.mxu0 0.0
        %366 = vmatpush1.msra.mxu0 0.0
        %367 = vmatprep.subr.mxu0 0.0
        %368 = vmatpush1.msra.mxu0 0.0
        %369 = vmatprep.subr.mxu0 0.0
        %370 = vmatpush1.msra.mxu0 0.0
        %371 = vmatprep.subr.mxu0 0.0
        %372 = vmatpush1.msra.mxu0 0.0
        %373 = vmatprep.subr.mxu0 0.0
        %374 = vmatpush1.msra.mxu0 0.0
        %375 = vmatprep.subr.mxu0 0.0
        %376 = vmatpush1.msra.mxu0 0.0
        %377 = vmatprep.subr.mxu0 0.0
        %378 = vmatpush1.msra.mxu0 0.0
        %379 = vmatprep.subr.mxu0 0.0
        %380 = vmatpush1.msra.mxu0 0.0
        %381 = vmatprep.subr.mxu0 0.0
        %382 = vmatpush1.msra.mxu0 0.0
        %383 = vmatprep.subr.mxu0 0.0
        %384 = vmatpush1.msra.mxu0 0.0
        %385 = vmatprep.subr.mxu0 0.0
        %386 = vmatpush1.msra.mxu0 0.0
        %387 = vmatprep.subr.mxu0 0.0
        %388 = vmatpush1.msra.mxu0 0.0
        %389 = vmatprep.subr.mxu0 0.0
        %390 = vmatpush1.msra.mxu0 0.0
        %391 = vmatprep.subr.mxu0 0.0
        %392 = vmatpush1.msra.mxu0 0.0
        %393 = vmatprep.subr.mxu0 0.0
        %394 = vmatpush1.msra.mxu0 0.0
        %395 = vmatprep.subr.mxu0 0.0
        %396 = vmatpush1.msra.mxu0 0.0
        %397 = vmatprep.subr.mxu0 0.0
        %398 = vmatpush1.msra.mxu0 0.0
        %399 = vmatprep.subr.mxu0 0.0
        %400 = vmatpush1.msra.mxu0 0.0
        %401 = vmatprep.mubr.f32.mxu0 0.0
        %402 = vmatmul.mubr.f32.gmra.mrb[0].mxu0 %v290
        %v403 = vpop.f32.mrb[0].mxu0
        %v404 = vadd.f32 0.0, %v403
        %v405 = vpop.f32.mrb[0].mxu0
        %406 = vmatprep.mubr.f32.mxu0 0.0
        %407 = vmatmul.mubr.f32.gmra.mrb[0].mxu0 %v293
        %v408 = vpop.f32.mrb[0].mxu0
        %v409 = vadd.f32 0.0, %v408
        %v410 = vpop.f32.mrb[0].mxu0
        %411 = vmatprep.mubr.f32.mxu0 0.0
        %412 = vmatmul.mubr.f32.gmra.mrb[0].mxu0 %v296
        %v413 = vpop.f32.mrb[0].mxu0
        %v414 = vadd.f32 0.0, %v413
        %v415 = vpop.f32.mrb[0].mxu0
        %416 = vmatprep.mubr.f32.mxu0 0.0
        %417 = vmatmul.mubr.f32.gmra.mrb[0].mxu0 %v299
        %v418 = vpop.f32.mrb[0].mxu0
        %v419 = vadd.f32 0.0, %v418
        %v420 = vpop.f32.mrb[0].mxu0
        %421 = vmatprep.mubr.f32.mxu0 0.0
        %422 = vmatmul.mubr.f32.gmra.mrb[0].mxu0 %v302
        %v423 = vpop.f32.mrb[0].mxu0
        %v424 = vadd.f32 0.0, %v423
        %v425 = vpop.f32.mrb[0].mxu0
        %426 = vmatprep.mubr.f32.mxu0 0.0
        %427 = vmatmul.mubr.f32.gmra.mrb[0].mxu0 %v305
        %v428 = vpop.f32.mrb[0].mxu0
        %v429 = vadd.f32 0.0, %v428
        %v430 = vpop.f32.mrb[0].mxu0
        %431 = vmatprep.mubr.f32.mxu0 0.0
        %432 = vmatmul.mubr.f32.gmra.mrb[0].mxu0 %v308
        %v433 = vpop.f32.mrb[0].mxu0
        %v434 = vadd.f32 0.0, %v433
        %v435 = vpop.f32.mrb[0].mxu0
        %436 = vmatprep.mubr.f32.mxu0 0.0
        %437 = vmatmul.mubr.f32.gmra.mrb[0].mxu0 %v311
        %v438 = vpop.f32.mrb[0].mxu0
        %v439 = vadd.f32 0.0, %v438
        %v440 = vpop.f32.mrb[0].mxu0
        %441 = vmatprep.mubr.f32.mxu0 0.0
        %442 = vmatmul.mubr.f32.gmra.mrb[0].mxu0 %v314
        %v443 = vpop.f32.mrb[0].mxu0
        %v444 = vadd.f32 0.0, %v443
        %v445 = vpop.f32.mrb[0].mxu0
        %446 = vmatprep.mubr.f32.mxu0 0.0
        %447 = vmatmul.mubr.f32.gmra.mrb[0].mxu0 %v317
        %v448 = vpop.f32.mrb[0].mxu0
        %v449 = vadd.f32 0.0, %v448
        %v450 = vpop.f32.mrb[0].mxu0
        %451 = vmatprep.mubr.f32.mxu0 0.0
        %452 = vmatmul.mubr.f32.gmra.mrb[0].mxu0 %v320
        %v453 = vpop.f32.mrb[0].mxu0
        %v454 = vadd.f32 0.0, %v453
        %v455 = vpop.f32.mrb[0].mxu0
        %456 = vmatprep.mubr.f32.mxu0 0.0
        %457 = vmatmul.mubr.f32.gmra.mrb[0].mxu0 %v323
        %v458 = vpop.f32.mrb[0].mxu0
        %v459 = vadd.f32 0.0, %v458
        %v460 = vpop.f32.mrb[0].mxu0
        %461 = vmatprep.mubr.f32.mxu0 0.0
        %462 = vmatmul.mubr.f32.gmra.mrb[0].mxu0 %v326
        %v463 = vpop.f32.mrb[0].mxu0
        %v464 = vadd.f32 0.0, %v463
        %v465 = vpop.f32.mrb[0].mxu0
        %466 = vmatprep.mubr.f32.mxu0 0.0
        %467 = vmatmul.mubr.f32.gmra.mrb[0].mxu0 %v329
        %v468 = vpop.f32.mrb[0].mxu0
        %v469 = vadd.f32 0.0, %v468
        %v470 = vpop.f32.mrb[0].mxu0
        %471 = vmatprep.mubr.f32.mxu0 0.0
        %472 = vmatmul.mubr.f32.gmra.mrb[0].mxu0 %v332
        %v473 = vpop.f32.mrb[0].mxu0
        %v474 = vadd.f32 0.0, %v473
        %v475 = vpop.f32.mrb[0].mxu0
        %476 = vmatprep.mubr.f32.mxu0 0.0
        %477 = vmatmul.mubr.f32.gmra.mrb[0].mxu0 %v335
        %v478 = vpop.f32.mrb[0].mxu0
        %v479 = vadd.f32 0.0, %v478
        %v480 = vpop.f32.mrb[0].mxu0
        %481 = vdwg.mxu0
        %v482 = vld [vmem:[%s264] sm:$0xff]
        %v483 = vld [vmem:[%s264 + $0x8] sm:$0xff]
        %v484 = vld [vmem:[%s264 + $0x10] sm:$0xff]
        %v485 = vld [vmem:[%s264 + $0x18] sm:$0xff]
        %v486 = vld [vmem:[%s264 + $0x20] sm:$0xff]
        %v487 = vld [vmem:[%s264 + $0x28] sm:$0xff]
        %v488 = vld [vmem:[%s264 + $0x30] sm:$0xff]
        %v489 = vld [vmem:[%s264 + $0x38] sm:$0xff]
        %v490 = vld [vmem:[%s264 + $0x40] sm:$0xff]
        %v491 = vld [vmem:[%s264 + $0x48] sm:$0xff]
        %v492 = vld [vmem:[%s264 + $0x50] sm:$0xff]
        %v493 = vld [vmem:[%s264 + $0x58] sm:$0xff]
        %v494 = vld [vmem:[%s264 + $0x60] sm:$0xff]
        %v495 = vld [vmem:[%s264 + $0x68] sm:$0xff]
        %v496 = vld [vmem:[%s264 + $0x70] sm:$0xff]
        %v497 = vld [vmem:[%s264 + $0x78] sm:$0xff]
        %498 = vmatprep.subr.mxu0 0.0
        %499 = vmatpush1.msra.mxu0 %v404
        %500 = vmatprep.subr.mxu0 0.0
        %501 = vmatpush1.msra.mxu0 %v409
        %502 = vmatprep.subr.mxu0 0.0
        %503 = vmatpush1.msra.mxu0 %v414
        %504 = vmatprep.subr.mxu0 0.0
        %505 = vmatpush1.msra.mxu0 %v419
        %506 = vmatprep.subr.mxu0 0.0
        %507 = vmatpush1.msra.mxu0 %v424
        %508 = vmatprep.subr.mxu0 0.0
        %509 = vmatpush1.msra.mxu0 %v429
        %510 = vmatprep.subr.mxu0 0.0
        %511 = vmatpush1.msra.mxu0 %v434
        %512 = vmatprep.subr.mxu0 0.0
        %513 = vmatpush1.msra.mxu0 %v439
        %514 = vmatprep.subr.mxu0 0.0
        %515 = vmatpush1.msra.mxu0 %v444
        %516 = vmatprep.subr.mxu0 0.0
        %517 = vmatpush1.msra.mxu0 %v449
        %518 = vmatprep.subr.mxu0 0.0
        %519 = vmatpush1.msra.mxu0 %v454
        %520 = vmatprep.subr.mxu0 0.0
        %521 = vmatpush1.msra.mxu0 %v459
        %522 = vmatprep.subr.mxu0 0.0
        %523 = vmatpush1.msra.mxu0 %v464
        %524 = vmatprep.subr.mxu0 0.0
        %525 = vmatpush1.msra.mxu0 %v469
        %526 = vmatprep.subr.mxu0 0.0
        %527 = vmatpush1.msra.mxu0 %v474
        %528 = vmatprep.subr.mxu0 0.0
        %529 = vmatpush1.msra.mxu0 %v479
        %530 = vmatprep.subr.mxu0 0.0
        %531 = vmatpush1.msra.mxu0 0.0
        %532 = vmatprep.subr.mxu0 0.0
        %533 = vmatpush1.msra.mxu0 0.0
        %534 = vmatprep.subr.mxu0 0.0
        %535 = vmatpush1.msra.mxu0 0.0
        %536 = vmatprep.subr.mxu0 0.0
        %537 = vmatpush1.msra.mxu0 0.0
        %538 = vmatprep.subr.mxu0 0.0
        %539 = vmatpush1.msra.mxu0 0.0
        %540 = vmatprep.subr.mxu0 0.0
        %541 = vmatpush1.msra.mxu0 0.0
        %542 = vmatprep.subr.mxu0 0.0
        %543 = vmatpush1.msra.mxu0 0.0
        %544 = vmatprep.subr.mxu0 0.0
        %545 = vmatpush1.msra.mxu0 0.0
        %546 = vmatprep.subr.mxu0 0.0
        %547 = vmatpush1.msra.mxu0 0.0
        %548 = vmatprep.subr.mxu0 0.0
        %549 = vmatpush1.msra.mxu0 0.0
        %550 = vmatprep.subr.mxu0 0.0
        %551 = vmatpush1.msra.mxu0 0.0
        %552 = vmatprep.subr.mxu0 0.0
        %553 = vmatpush1.msra.mxu0 0.0
        %554 = vmatprep.subr.mxu0 0.0
        %555 = vmatpush1.msra.mxu0 0.0
        %556 = vmatprep.subr.mxu0 0.0
        %557 = vmatpush1.msra.mxu0 0.0
        %558 = vmatprep.subr.mxu0 0.0
        %559 = vmatpush1.msra.mxu0 0.0
        %560 = vmatprep.subr.mxu0 0.0
        %561 = vmatpush1.msra.mxu0 0.0
        %562 = vmatprep.mubr.f32.mxu0 0.0
        %563 = vmatmul.mubr.f32.gmra.mrb[0].mxu0 %v482
        %v564 = vpop.f32.mrb[0].mxu0
        %v565 = vadd.f32 0.0, %v564
        %v566 = vpop.f32.mrb[0].mxu0
        %567 = vmatprep.mubr.f32.mxu0 0.0
        %568 = vmatmul.mubr.f32.gmra.mrb[0].mxu0 %v483
        %v569 = vpop.f32.mrb[0].mxu0
        %v570 = vadd.f32 0.0, %v569
        %v571 = vpop.f32.mrb[0].mxu0
        %572 = vmatprep.mubr.f32.mxu0 0.0
        %573 = vmatmul.mubr.f32.gmra.mrb[0].mxu0 %v484
        %v574 = vpop.f32.mrb[0].mxu0
        %v575 = vadd.f32 0.0, %v574
        %v576 = vpop.f32.mrb[0].mxu0
        %577 = vmatprep.mubr.f32.mxu0 0.0
        %578 = vmatmul.mubr.f32.gmra.mrb[0].mxu0 %v485
        %v579 = vpop.f32.mrb[0].mxu0
        %v580 = vadd.f32 0.0, %v579
        %v581 = vpop.f32.mrb[0].mxu0
        %582 = vmatprep.mubr.f32.mxu0 0.0
        %583 = vmatmul.mubr.f32.gmra.mrb[0].mxu0 %v486
        %v584 = vpop.f32.mrb[0].mxu0
        %v585 = vadd.f32 0.0, %v584
        %v586 = vpop.f32.mrb[0].mxu0
        %587 = vmatprep.mubr.f32.mxu0 0.0
        %588 = vmatmul.mubr.f32.gmra.mrb[0].mxu0 %v487
        %v589 = vpop.f32.mrb[0].mxu0
        %v590 = vadd.f32 0.0, %v589
        %v591 = vpop.f32.mrb[0].mxu0
        %592 = vmatprep.mubr.f32.mxu0 0.0
        %593 = vmatmul.mubr.f32.gmra.mrb[0].mxu0 %v488
        %v594 = vpop.f32.mrb[0].mxu0
        %v595 = vadd.f32 0.0, %v594
        %v596 = vpop.f32.mrb[0].mxu0
        %597 = vmatprep.mubr.f32.mxu0 0.0
        %598 = vmatmul.mubr.f32.gmra.mrb[0].mxu0 %v489
        %v599 = vpop.f32.mrb[0].mxu0
        %v600 = vadd.f32 0.0, %v599
        %v601 = vpop.f32.mrb[0].mxu0
        %602 = vmatprep.mubr.f32.mxu0 0.0
        %603 = vmatmul.mubr.f32.gmra.mrb[0].mxu0 %v490
        %v604 = vpop.f32.mrb[0].mxu0
        %v605 = vadd.f32 0.0, %v604
        %v606 = vpop.f32.mrb[0].mxu0
        %607 = vmatprep.mubr.f32.mxu0 0.0
        %608 = vmatmul.mubr.f32.gmra.mrb[0].mxu0 %v491
        %v609 = vpop.f32.mrb[0].mxu0
        %v610 = vadd.f32 0.0, %v609
        %v611 = vpop.f32.mrb[0].mxu0
        %612 = vmatprep.mubr.f32.mxu0 0.0
        %613 = vmatmul.mubr.f32.gmra.mrb[0].mxu0 %v492
        %v614 = vpop.f32.mrb[0].mxu0
        %v615 = vadd.f32 0.0, %v614
        %v616 = vpop.f32.mrb[0].mxu0
        %617 = vmatprep.mubr.f32.mxu0 0.0
        %618 = vmatmul.mubr.f32.gmra.mrb[0].mxu0 %v493
        %v619 = vpop.f32.mrb[0].mxu0
        %v620 = vadd.f32 0.0, %v619
        %v621 = vpop.f32.mrb[0].mxu0
        %622 = vmatprep.mubr.f32.mxu0 0.0
        %623 = vmatmul.mubr.f32.gmra.mrb[0].mxu0 %v494
        %v624 = vpop.f32.mrb[0].mxu0
        %v625 = vadd.f32 0.0, %v624
        %v626 = vpop.f32.mrb[0].mxu0
        %627 = vmatprep.mubr.f32.mxu0 0.0
        %628 = vmatmul.mubr.f32.gmra.mrb[0].mxu0 %v495
        %v629 = vpop.f32.mrb[0].mxu0
        %v630 = vadd.f32 0.0, %v629
        %v631 = vpop.f32.mrb[0].mxu0
        %632 = vmatprep.mubr.f32.mxu0 0.0
        %633 = vmatmul.mubr.f32.gmra.mrb[0].mxu0 %v496
        %v634 = vpop.f32.mrb[0].mxu0
        %v635 = vadd.f32 0.0, %v634
        %v636 = vpop.f32.mrb[0].mxu0
        %637 = vmatprep.mubr.f32.mxu0 0.0
        %638 = vmatmul.mubr.f32.gmra.mrb[0].mxu0 %v497
        %v639 = vpop.f32.mrb[0].mxu0
        %v640 = vadd.f32 0.0, %v639
        %v641 = vpop.f32.mrb[0].mxu0
        %642 = vdwg.mxu0
        %v643 = vld [vmem:[%s3] sm:$0x1]
        %v645 = vlaneseq
        %v646 = vshrl.u32 %v645, 7
        %v647 = vsub.s32 0, %v646
        %v648 = vrot.slane %v643, %v647
        %650 = vmatprep.subr.mxu0 0.0
        %651 = vmatpush1.msra.mxu0 %v565
        %652 = vmatprep.subr.mxu0 0.0
        %653 = vmatpush1.msra.mxu0 %v570
        %654 = vmatprep.subr.mxu0 0.0
        %655 = vmatpush1.msra.mxu0 %v575
        %656 = vmatprep.subr.mxu0 0.0
        %657 = vmatpush1.msra.mxu0 %v580
        %658 = vmatprep.subr.mxu0 0.0
        %659 = vmatpush1.msra.mxu0 %v585
        %660 = vmatprep.subr.mxu0 0.0
        %661 = vmatpush1.msra.mxu0 %v590
        %662 = vmatprep.subr.mxu0 0.0
        %663 = vmatpush1.msra.mxu0 %v595
        %664 = vmatprep.subr.mxu0 0.0
        %665 = vmatpush1.msra.mxu0 %v600
        %666 = vmatprep.subr.mxu0 0.0
        %667 = vmatpush1.msra.mxu0 %v605
        %668 = vmatprep.subr.mxu0 0.0
        %669 = vmatpush1.msra.mxu0 %v610
        %670 = vmatprep.subr.mxu0 0.0
        %671 = vmatpush1.msra.mxu0 %v615
        %672 = vmatprep.subr.mxu0 0.0
        %673 = vmatpush1.msra.mxu0 %v620
        %674 = vmatprep.subr.mxu0 0.0
        %675 = vmatpush1.msra.mxu0 %v625
        %676 = vmatprep.subr.mxu0 0.0
        %677 = vmatpush1.msra.mxu0 %v630
        %678 = vmatprep.subr.mxu0 0.0
        %679 = vmatpush1.msra.mxu0 %v635
        %680 = vmatprep.subr.mxu0 0.0
        %681 = vmatpush1.msra.mxu0 %v640
        %682 = vmatprep.subr.mxu0 0.0
        %683 = vmatpush1.msra.mxu0 0.0
        %684 = vmatprep.subr.mxu0 0.0
        %685 = vmatpush1.msra.mxu0 0.0
        %686 = vmatprep.subr.mxu0 0.0
        %687 = vmatpush1.msra.mxu0 0.0
        %688 = vmatprep.subr.mxu0 0.0
        %689 = vmatpush1.msra.mxu0 0.0
        %690 = vmatprep.subr.mxu0 0.0
        %691 = vmatpush1.msra.mxu0 0.0
        %692 = vmatprep.subr.mxu0 0.0
        %693 = vmatpush1.msra.mxu0 0.0
        %694 = vmatprep.subr.mxu0 0.0
        %695 = vmatpush1.msra.mxu0 0.0
        %696 = vmatprep.subr.mxu0 0.0
        %697 = vmatpush1.msra.mxu0 0.0
        %698 = vmatprep.subr.mxu0 0.0
        %699 = vmatpush1.msra.mxu0 0.0
        %700 = vmatprep.subr.mxu0 0.0
        %701 = vmatpush1.msra.mxu0 0.0
        %702 = vmatprep.subr.mxu0 0.0
        %703 = vmatpush1.msra.mxu0 0.0
        %704 = vmatprep.subr.mxu0 0.0
        %705 = vmatpush1.msra.mxu0 0.0
        %706 = vmatprep.subr.mxu0 0.0
        %707 = vmatpush1.msra.mxu0 0.0
        %708 = vmatprep.subr.mxu0 0.0
        %709 = vmatpush1.msra.mxu0 0.0
        %710 = vmatprep.subr.mxu0 0.0
        %711 = vmatpush1.msra.mxu0 0.0
        %712 = vmatprep.subr.mxu0 0.0
        %713 = vmatpush1.msra.mxu0 0.0
        %714 = vmatprep.mubr.f32.mxu0 0.0
        %715 = vmatmul.mubr.f32.gmra.mrb[0].mxu0 %v482
        %v716 = vpop.f32.mrb[0].mxu0
        %v717 = vadd.f32 %v648, %v716
        %v718 = vpop.f32.mrb[0].mxu0
        %719 = vmatprep.mubr.f32.mxu0 0.0
        %720 = vmatmul.mubr.f32.gmra.mrb[0].mxu0 %v483
        %v721 = vpop.f32.mrb[0].mxu0
        %v722 = vadd.f32 %v648, %v721
        %v723 = vpop.f32.mrb[0].mxu0
        %724 = vmatprep.mubr.f32.mxu0 0.0
        %725 = vmatmul.mubr.f32.gmra.mrb[0].mxu0 %v484
        %v726 = vpop.f32.mrb[0].mxu0
        %v727 = vadd.f32 %v648, %v726
        %v728 = vpop.f32.mrb[0].mxu0
        %729 = vmatprep.mubr.f32.mxu0 0.0
        %730 = vmatmul.mubr.f32.gmra.mrb[0].mxu0 %v485
        %v731 = vpop.f32.mrb[0].mxu0
        %v732 = vadd.f32 %v648, %v731
        %v733 = vpop.f32.mrb[0].mxu0
        %734 = vmatprep.mubr.f32.mxu0 0.0
        %735 = vmatmul.mubr.f32.gmra.mrb[0].mxu0 %v486
        %v736 = vpop.f32.mrb[0].mxu0
        %v737 = vadd.f32 %v648, %v736
        %v738 = vpop.f32.mrb[0].mxu0
        %739 = vmatprep.mubr.f32.mxu0 0.0
        %740 = vmatmul.mubr.f32.gmra.mrb[0].mxu0 %v487
        %v741 = vpop.f32.mrb[0].mxu0
        %v742 = vadd.f32 %v648, %v741
        %v743 = vpop.f32.mrb[0].mxu0
        %744 = vmatprep.mubr.f32.mxu0 0.0
        %745 = vmatmul.mubr.f32.gmra.mrb[0].mxu0 %v488
        %v746 = vpop.f32.mrb[0].mxu0
        %v747 = vadd.f32 %v648, %v746
        %v748 = vpop.f32.mrb[0].mxu0
        %749 = vmatprep.mubr.f32.mxu0 0.0
        %750 = vmatmul.mubr.f32.gmra.mrb[0].mxu0 %v489
        %v751 = vpop.f32.mrb[0].mxu0
        %v752 = vadd.f32 %v648, %v751
        %v753 = vpop.f32.mrb[0].mxu0
        %754 = vmatprep.mubr.f32.mxu0 0.0
        %755 = vmatmul.mubr.f32.gmra.mrb[0].mxu0 %v490
        %v756 = vpop.f32.mrb[0].mxu0
        %v757 = vadd.f32 %v648, %v756
        %v758 = vpop.f32.mrb[0].mxu0
        %759 = vmatprep.mubr.f32.mxu0 0.0
        %760 = vmatmul.mubr.f32.gmra.mrb[0].mxu0 %v491
        %v761 = vpop.f32.mrb[0].mxu0
        %v762 = vadd.f32 %v648, %v761
        %v763 = vpop.f32.mrb[0].mxu0
        %764 = vmatprep.mubr.f32.mxu0 0.0
        %765 = vmatmul.mubr.f32.gmra.mrb[0].mxu0 %v492
        %v766 = vpop.f32.mrb[0].mxu0
        %v767 = vadd.f32 %v648, %v766
        %v768 = vpop.f32.mrb[0].mxu0
        %769 = vmatprep.mubr.f32.mxu0 0.0
        %770 = vmatmul.mubr.f32.gmra.mrb[0].mxu0 %v493
        %v771 = vpop.f32.mrb[0].mxu0
        %v772 = vadd.f32 %v648, %v771
        %v773 = vpop.f32.mrb[0].mxu0
        %774 = vmatprep.mubr.f32.mxu0 0.0
        %775 = vmatmul.mubr.f32.gmra.mrb[0].mxu0 %v494
        %v776 = vpop.f32.mrb[0].mxu0
        %v777 = vadd.f32 %v648, %v776
        %v778 = vpop.f32.mrb[0].mxu0
        %779 = vmatprep.mubr.f32.mxu0 0.0
        %780 = vmatmul.mubr.f32.gmra.mrb[0].mxu0 %v495
        %v781 = vpop.f32.mrb[0].mxu0
        %v782 = vadd.f32 %v648, %v781
        %v783 = vpop.f32.mrb[0].mxu0
        %784 = vmatprep.mubr.f32.mxu0 0.0
        %785 = vmatmul.mubr.f32.gmra.mrb[0].mxu0 %v496
        %v786 = vpop.f32.mrb[0].mxu0
        %v787 = vadd.f32 %v648, %v786
        %v788 = vpop.f32.mrb[0].mxu0
        %789 = vmatprep.mubr.f32.mxu0 0.0
        %790 = vmatmul.mubr.f32.gmra.mrb[0].mxu0 %v497
        %v791 = vpop.f32.mrb[0].mxu0
        %v792 = vadd.f32 %v648, %v791
        %v793 = vpop.f32.mrb[0].mxu0
        %794 = vdwg.mxu0
        %v795 = vmax.f32 %v717, 0.0
        %v796 = vmax.f32 %v722, 0.0
        %v797 = vmax.f32 %v727, 0.0
        %v798 = vmax.f32 %v732, 0.0
        %v799 = vmax.f32 %v737, 0.0
        %v800 = vmax.f32 %v742, 0.0
        %v801 = vmax.f32 %v747, 0.0
        %v802 = vmax.f32 %v752, 0.0
        %v803 = vmax.f32 %v757, 0.0
        %v804 = vmax.f32 %v762, 0.0
        %v805 = vmax.f32 %v767, 0.0
        %v806 = vmax.f32 %v772, 0.0
        %v807 = vmax.f32 %v777, 0.0
        %v808 = vmax.f32 %v782, 0.0
        %v809 = vmax.f32 %v787, 0.0
        %v810 = vmax.f32 %v792, 0.0
        %v811 = vld [vmem:[%s4] sm:$0xff]
        %v812 = vld [vmem:[%s5] sm:$0x1]
        %v814 = vlaneseq
        %v815 = vshrl.u32 %v814, 7
        %v816 = vsub.s32 0, %v815
        %v817 = vrot.slane %v812, %v816
        %vm819 = vcmask 64512
        %v821 = vsel %vm819, %v795, 0
        %v824 = vsel %vm819, %v796, 0
        %v827 = vsel %vm819, %v797, 0
        %v830 = vsel %vm819, %v798, 0
        %v833 = vsel %vm819, %v799, 0
        %v836 = vsel %vm819, %v800, 0
        %v839 = vsel %vm819, %v801, 0
        %v842 = vsel %vm819, %v802, 0
        %v845 = vsel %vm819, %v803, 0
        %v848 = vsel %vm819, %v804, 0
        %v851 = vsel %vm819, %v805, 0
        %v854 = vsel %vm819, %v806, 0
        %v857 = vsel %vm819, %v807, 0
        %v860 = vsel %vm819, %v808, 0
        %v863 = vsel %vm819, %v809, 0
        %v866 = vsel %vm819, %v810, 0
        %868 = vmatprep.subr.mxu0 0.0
        %869 = vmatpush1.msra.mxu0 %v811
        %870 = vmatprep.subr.mxu0 0.0
        %871 = vmatpush1.msra.mxu0 0.0
        %872 = vmatprep.subr.mxu0 0.0
        %873 = vmatpush1.msra.mxu0 0.0
        %874 = vmatprep.subr.mxu0 0.0
        %875 = vmatpush1.msra.mxu0 0.0
        %876 = vmatprep.subr.mxu0 0.0
        %877 = vmatpush1.msra.mxu0 0.0
        %878 = vmatprep.subr.mxu0 0.0
        %879 = vmatpush1.msra.mxu0 0.0
        %880 = vmatprep.subr.mxu0 0.0
        %881 = vmatpush1.msra.mxu0 0.0
        %882 = vmatprep.subr.mxu0 0.0
        %883 = vmatpush1.msra.mxu0 0.0
        %884 = vmatprep.subr.mxu0 0.0
        %885 = vmatpush1.msra.mxu0 0.0
        %886 = vmatprep.subr.mxu0 0.0
        %887 = vmatpush1.msra.mxu0 0.0
        %888 = vmatprep.subr.mxu0 0.0
        %889 = vmatpush1.msra.mxu0 0.0
        %890 = vmatprep.subr.mxu0 0.0
        %891 = vmatpush1.msra.mxu0 0.0
        %892 = vmatprep.subr.mxu0 0.0
        %893 = vmatpush1.msra.mxu0 0.0
        %894 = vmatprep.subr.mxu0 0.0
        %895 = vmatpush1.msra.mxu0 0.0
        %896 = vmatprep.subr.mxu0 0.0
        %897 = vmatpush1.msra.mxu0 0.0
        %898 = vmatprep.subr.mxu0 0.0
        %899 = vmatpush1.msra.mxu0 0.0
        %900 = vmatprep.subr.mxu0 0.0
        %901 = vmatpush1.msra.mxu0 0.0
        %902 = vmatprep.subr.mxu0 0.0
        %903 = vmatpush1.msra.mxu0 0.0
        %904 = vmatprep.subr.mxu0 0.0
        %905 = vmatpush1.msra.mxu0 0.0
        %906 = vmatprep.subr.mxu0 0.0
        %907 = vmatpush1.msra.mxu0 0.0
        %908 = vmatprep.subr.mxu0 0.0
        %909 = vmatpush1.msra.mxu0 0.0
        %910 = vmatprep.subr.mxu0 0.0
        %911 = vmatpush1.msra.mxu0 0.0
        %912 = vmatprep.subr.mxu0 0.0
        %913 = vmatpush1.msra.mxu0 0.0
        %914 = vmatprep.subr.mxu0 0.0
        %915 = vmatpush1.msra.mxu0 0.0
        %916 = vmatprep.subr.mxu0 0.0
        %917 = vmatpush1.msra.mxu0 0.0
        %918 = vmatprep.subr.mxu0 0.0
        %919 = vmatpush1.msra.mxu0 0.0
        %920 = vmatprep.subr.mxu0 0.0
        %921 = vmatpush1.msra.mxu0 0.0
        %922 = vmatprep.subr.mxu0 0.0
        %923 = vmatpush1.msra.mxu0 0.0
        %924 = vmatprep.subr.mxu0 0.0
        %925 = vmatpush1.msra.mxu0 0.0
        %926 = vmatprep.subr.mxu0 0.0
        %927 = vmatpush1.msra.mxu0 0.0
        %928 = vmatprep.subr.mxu0 0.0
        %929 = vmatpush1.msra.mxu0 0.0
        %930 = vmatprep.subr.mxu0 0.0
        %931 = vmatpush1.msra.mxu0 0.0
        %932 = vmatprep.mubr.f32.mxu0 0.0
        %933 = vmatmul.mubr.f32.gmra.mrb[0].mxu0 %v821
        %v934 = vpop.f32.mrb[0].mxu0
        %v935 = vadd.f32 %v817, %v934
        %v936 = vpop.f32.mrb[0].mxu0
        %937 = vmatprep.mubr.f32.mxu0 0.0
        %938 = vmatmul.mubr.f32.gmra.mrb[0].mxu0 %v824
        %v939 = vpop.f32.mrb[0].mxu0
        %v940 = vadd.f32 %v817, %v939
        %v941 = vpop.f32.mrb[0].mxu0
        %942 = vmatprep.mubr.f32.mxu0 0.0
        %943 = vmatmul.mubr.f32.gmra.mrb[0].mxu0 %v827
        %v944 = vpop.f32.mrb[0].mxu0
        %v945 = vadd.f32 %v817, %v944
        %v946 = vpop.f32.mrb[0].mxu0
        %947 = vmatprep.mubr.f32.mxu0 0.0
        %948 = vmatmul.mubr.f32.gmra.mrb[0].mxu0 %v830
        %v949 = vpop.f32.mrb[0].mxu0
        %v950 = vadd.f32 %v817, %v949
        %v951 = vpop.f32.mrb[0].mxu0
        %952 = vmatprep.mubr.f32.mxu0 0.0
        %953 = vmatmul.mubr.f32.gmra.mrb[0].mxu0 %v833
        %v954 = vpop.f32.mrb[0].mxu0
        %v955 = vadd.f32 %v817, %v954
        %v956 = vpop.f32.mrb[0].mxu0
        %957 = vmatprep.mubr.f32.mxu0 0.0
        %958 = vmatmul.mubr.f32.gmra.mrb[0].mxu0 %v836
        %v959 = vpop.f32.mrb[0].mxu0
        %v960 = vadd.f32 %v817, %v959
        %v961 = vpop.f32.mrb[0].mxu0
        %962 = vmatprep.mubr.f32.mxu0 0.0
        %963 = vmatmul.mubr.f32.gmra.mrb[0].mxu0 %v839
        %v964 = vpop.f32.mrb[0].mxu0
        %v965 = vadd.f32 %v817, %v964
        %v966 = vpop.f32.mrb[0].mxu0
        %967 = vmatprep.mubr.f32.mxu0 0.0
        %968 = vmatmul.mubr.f32.gmra.mrb[0].mxu0 %v842
        %v969 = vpop.f32.mrb[0].mxu0
        %v970 = vadd.f32 %v817, %v969
        %v971 = vpop.f32.mrb[0].mxu0
        %972 = vmatprep.mubr.f32.mxu0 0.0
        %973 = vmatmul.mubr.f32.gmra.mrb[0].mxu0 %v845
        %v974 = vpop.f32.mrb[0].mxu0
        %v975 = vadd.f32 %v817, %v974
        %v976 = vpop.f32.mrb[0].mxu0
        %977 = vmatprep.mubr.f32.mxu0 0.0
        %978 = vmatmul.mubr.f32.gmra.mrb[0].mxu0 %v848
        %v979 = vpop.f32.mrb[0].mxu0
        %v980 = vadd.f32 %v817, %v979
        %v981 = vpop.f32.mrb[0].mxu0
        %982 = vmatprep.mubr.f32.mxu0 0.0
        %983 = vmatmul.mubr.f32.gmra.mrb[0].mxu0 %v851
        %v984 = vpop.f32.mrb[0].mxu0
        %v985 = vadd.f32 %v817, %v984
        %v986 = vpop.f32.mrb[0].mxu0
        %987 = vmatprep.mubr.f32.mxu0 0.0
        %988 = vmatmul.mubr.f32.gmra.mrb[0].mxu0 %v854
        %v989 = vpop.f32.mrb[0].mxu0
        %v990 = vadd.f32 %v817, %v989
        %v991 = vpop.f32.mrb[0].mxu0
        %992 = vmatprep.mubr.f32.mxu0 0.0
        %993 = vmatmul.mubr.f32.gmra.mrb[0].mxu0 %v857
        %v994 = vpop.f32.mrb[0].mxu0
        %v995 = vadd.f32 %v817, %v994
        %v996 = vpop.f32.mrb[0].mxu0
        %997 = vmatprep.mubr.f32.mxu0 0.0
        %998 = vmatmul.mubr.f32.gmra.mrb[0].mxu0 %v860
        %v999 = vpop.f32.mrb[0].mxu0
        %v1000 = vadd.f32 %v817, %v999
        %v1001 = vpop.f32.mrb[0].mxu0
        %1002 = vmatprep.mubr.f32.mxu0 0.0
        %1003 = vmatmul.mubr.f32.gmra.mrb[0].mxu0 %v863
        %v1004 = vpop.f32.mrb[0].mxu0
        %v1005 = vadd.f32 %v817, %v1004
        %v1006 = vpop.f32.mrb[0].mxu0
        %1007 = vmatprep.mubr.f32.mxu0 0.0
        %1008 = vmatmul.mubr.f32.gmra.mrb[0].mxu0 %v866
        %v1009 = vpop.f32.mrb[0].mxu0
        %v1010 = vadd.f32 %v817, %v1009
        %v1011 = vpop.f32.mrb[0].mxu0
        %1012 = vdwg.mxu0
        %1013 = vst [vmem:[%s259] sm:$0xff] %v935
        %1014 = vst [vmem:[%s259 + $0x8] sm:$0xff] %v940
        %1015 = vst [vmem:[%s259 + $0x10] sm:$0xff] %v945
        %1016 = vst [vmem:[%s259 + $0x18] sm:$0xff] %v950
        %1017 = vst [vmem:[%s259 + $0x20] sm:$0xff] %v955
        %1018 = vst [vmem:[%s259 + $0x28] sm:$0xff] %v960
        %1019 = vst [vmem:[%s259 + $0x30] sm:$0xff] %v965
        %1020 = vst [vmem:[%s259 + $0x38] sm:$0xff] %v970
        %1021 = vst [vmem:[%s259 + $0x40] sm:$0xff] %v975
        %1022 = vst [vmem:[%s259 + $0x48] sm:$0xff] %v980
        %1023 = vst [vmem:[%s259 + $0x50] sm:$0xff] %v985
        %1024 = vst [vmem:[%s259 + $0x58] sm:$0xff] %v990
        %1025 = vst [vmem:[%s259 + $0x60] sm:$0xff] %v995
        %1026 = vst [vmem:[%s259 + $0x68] sm:$0xff] %v1000
        %1027 = vst [vmem:[%s259 + $0x70] sm:$0xff] %v1005
        %1028 = vst [vmem:[%s259 + $0x78] sm:$0xff] %v1010
        %s1029 = sand.u32 %s164, 1
        %s1030 = scalar_lea.sflag [#allocation3], %s1029
        %s1031 = sand.u32 %s164, 1
        %s1032 = smul.addr %s1031, 128
        %s1033 = scalar_lea.vmem [#allocation2], %s1032
        // Predicated region
        $region45: #{tpu_custom_call.1} parent=43 // pred_check
          %p1034 = pneg %p174
        $region46: #{tpu_custom_call.1} parent=43 // pred_check_branch
          %1036 = sbr.rel (%p1034) target = $region48
        $region47: #{tpu_custom_call.1} parent=43 // pred_region
          %s1038 = ssub.s32 2048, 2048
          %1039 = vsyncadd %s1030, %s1038
          %s1040 = smul.addr %s20, 16
          %s1041 = smul.addr %s1040, 128
          %s1042 = scalar_lea.hbm %s6, %s1041
          %s1043 = sshll.u32 %s1033, 4
          %s1044 = int_to_ptr.vmem [resolvable:$true] %s1043
          %1049 = dma.vmem_to_hbm [thread:$0]  %s1044, 2048, %s1042, %s1030, 128, 128, 8
        $region48: #{tpu_custom_call.1} parent=43 // pred_fallthru
          _
      $region44: #{tpu_custom_call.1} parent=5 // pred_fallthru
        _
      %p1050 = scmp.le.s32.totalorder 2, %s15
      // Predicated region
      $region49: #{tpu_custom_call.1} parent=5 // pred_check
        %p1051 = pneg %p1050
      $region50: #{tpu_custom_call.1} parent=5 // pred_check_branch
        %1053 = sbr.rel (%p1051) target = $region52
      $region51: #{tpu_custom_call.1} parent=5 // pred_region
        %s1054 = ssub.s32 %s15, 2
        // Predicated region
        $region53: #{tpu_custom_call.1} parent=51 // pred_check
          %p1055 = pneg %p180
        $region54: #{tpu_custom_call.1} parent=51 // pred_check_branch
          %1057 = sbr.rel (%p1055) target = $region56
        $region55: #{tpu_custom_call.1} parent=51 // pred_region
          %s1058 = sand.u32 %s165, 1
          %s1059 = scalar_lea.sflag [#allocation3], %s1058
          %s1060 = sand.u32 %s165, 1
          %s1061 = smul.addr %s1060, 128
          %s1062 = scalar_lea.vmem [#allocation2], %s1061
          %1063 = dma.done %s1059, 2048
        $region56: #{tpu_custom_call.1} parent=51 // pred_fallthru
          _
      $region52: #{tpu_custom_call.1} parent=5 // pred_fallthru
        _
    $region6: #{tpu_custom_call.1} parent=1 // loop_footer
      %s19 = sadd.s32 1, %s15
    $region7: #{tpu_custom_call.1} parent=1 // loop_footer_branch
      %14 = sbr.rel target = $region3
    $region8: #{tpu_custom_call.1} parent=1 // loop_exit
      _
    %1064 = vsyncpa [#allocation3], 1
    %s1065 = scalar_lea.sflag [#allocation3], 1
    %1066 = vsyncpa %s1065, 1

</llo_original>
